<compile_context>
chip_gen: v7x
topology: tpu7x:2x2x1
jax: 0.10.0
libtpu: 0.0.40
codegen_flags: <defaults>
</compile_context>

<pallas_src>
import functools

import jax
import jax.numpy as jnp
from jax.experimental import pallas as pl
from jax.experimental.pallas import tpu as pltpu


# Scoped VMEM limit: big enough to unlock large row tiles on v5e (16 MiB scoped default)
# while staying well inside v7x's 64 MiB physical VMEM.
_VMEM_LIMIT_BYTES = 48 * 1024 * 1024

# Target rows per grid step (measured sweet spot for mem-bound kernels is ~512-1024 rows;
# keep it bounded so the row grid retains many steps for megacore sharding on v7x).
_LN_ROW_TILE = 1024
_PW_ROW_TILE = 512


def _cparams():
    return pltpu.CompilerParams(
        dimension_semantics=("parallel",),
        vmem_limit_bytes=_VMEM_LIMIT_BYTES,
    )


def _pick_row_tile(n_rows, target):
    """Largest multiple-of-8 row tile <= min(target, n_rows); full extent for tiny inputs."""
    if n_rows <= 8:
        return n_rows
    rt = min(target, n_rows)
    rt -= rt % 8
    return max(rt, 8)


# ---------------------------------------------------------------------------
# 1) BiasFree LayerNorm kernel (the perf-review target)
# ---------------------------------------------------------------------------
def _ln_biasfree_kernel(x_ref, w_ref, m_ref, mt_ref, o_ref, *, inv_c):
    # x_ref : (RT, L) with L = k*C (lane-dense, k original rows folded per kernel row)
    # w_ref : (1, L)  weight tiled k times
    # m_ref : (L, k)  block-diagonal 0/1 segment matrix, mt_ref = m_ref.T
    x = x_ref[...].astype(jnp.float32)
    m = m_ref[...]
    s1 = jnp.dot(x, m, preferred_element_type=jnp.float32)       # per-segment sum(x)
    s2 = jnp.dot(x * x, m, preferred_element_type=jnp.float32)   # per-segment sum(x^2)
    mean = s1 * inv_c
    var = s2 * inv_c - mean * mean                               # one-pass, unbiased=False
    inv = jax.lax.rsqrt(var + 1e-5)                              # (RT, k)
    inv_full = jnp.dot(inv, mt_ref[...], preferred_element_type=jnp.float32)
    # BiasFree form: the mean is used for the variance only, NOT subtracted from x.
    o_ref[...] = (x * inv_full * w_ref[...]).astype(o_ref.dtype)


def biasfree_layernorm(x, weight, row_tile_target=_LN_ROW_TILE):
    """BiasFree_LayerNorm: x / sqrt(var(x, -1) + 1e-5) * weight.  x: (..., C)."""
    C = x.shape[-1]
    assert weight.shape == (C,)
    orig_shape = x.shape
    x2 = x.reshape(-1, C)
    n_rows = x2.shape[0]

    # Lane-density fold: pack k = 128//C original rows into the 128-lane axis when possible.
    k = 1
    if C < 128 and (128 % C) == 0 and (n_rows % (128 // C)) == 0:
        k = 128 // C
    L = k * C
    rows = n_rows // k
    xf = x2.reshape(rows, L)

    w_full = jnp.tile(weight.astype(jnp.float32).reshape(1, C), (1, k))      # (1, L)
    seg = jnp.arange(L) // C
    m = (seg[:, None] == jnp.arange(k)[None, :]).astype(jnp.float32)         # (L, k)
    mt = jnp.transpose(m)                                                    # (k, L)

    rt = _pick_row_tile(rows, row_tile_target)
    grid = (pl.cdiv(rows, rt),)   # no padding copy: ragged last block is masked on store

    out = pl.pallas_call(
        functools.partial(_ln_biasfree_kernel, inv_c=1.0 / C),
        out_shape=jax.ShapeDtypeStruct((rows, L), x.dtype),
        grid_spec=pltpu.PrefetchScalarGridSpec(
            num_scalar_prefetch=0,
            grid=grid,
            in_specs=[
                pl.BlockSpec((rt, L), lambda i: (i, 0)),
                pl.BlockSpec((1, L), lambda i: (0, 0)),
                pl.BlockSpec((L, k), lambda i: (0, 0)),
                pl.BlockSpec((k, L), lambda i: (0, 0)),
            ],
            out_specs=pl.BlockSpec((rt, L), lambda i: (i, 0)),
        ),
        compiler_params=_cparams(),
    )(xf, w_full, m, mt)

    return out.reshape(orig_shape)


# ---------------------------------------------------------------------------
# 2) 1x1 convolutions as row-tiled matmuls (fused bias / residual)
# ---------------------------------------------------------------------------
def _pointwise_kernel(x_ref, w_ref, b_ref, o_ref):
    y = jnp.dot(x_ref[...].astype(jnp.float32), w_ref[...].astype(jnp.float32),
                preferred_element_type=jnp.float32)
    o_ref[...] = (y + b_ref[...]).astype(o_ref.dtype)


def _pointwise_res_kernel(x_ref, w_ref, b_ref, r_ref, o_ref):
    y = jnp.dot(x_ref[...].astype(jnp.float32), w_ref[...].astype(jnp.float32),
                preferred_element_type=jnp.float32)
    o_ref[...] = (y + b_ref[...] + r_ref[...].astype(jnp.float32)).astype(o_ref.dtype)


def pointwise_conv(x2d, w, bias=None, residual=None, row_tile_target=_PW_ROW_TILE):
    """1x1 conv over channels-last rows: (rows, Cin) @ (Cin, Cout) [+ bias] [+ residual]."""
    rows, cin = x2d.shape
    cout = w.shape[1]
    if bias is None:
        bias = jnp.zeros((cout,), jnp.float32)
    b2 = bias.astype(jnp.float32).reshape(1, cout)

    rt = _pick_row_tile(rows, row_tile_target)
    grid = (pl.cdiv(rows, rt),)

    x_spec = pl.BlockSpec((rt, cin), lambda i: (i, 0))
    w_spec = pl.BlockSpec((cin, cout), lambda i: (0, 0))
    b_spec = pl.BlockSpec((1, cout), lambda i: (0, 0))
    o_spec = pl.BlockSpec((rt, cout), lambda i: (i, 0))
    out_shape = jax.ShapeDtypeStruct((rows, cout), x2d.dtype)

    if residual is None:
        return pl.pallas_call(
            _pointwise_kernel,
            out_shape=out_shape,
            grid_spec=pltpu.PrefetchScalarGridSpec(
                num_scalar_prefetch=0, grid=grid,
                in_specs=[x_spec, w_spec, b_spec],
                out_specs=o_spec),
            compiler_params=_cparams(),
        )(x2d, w, b2)

    r_spec = pl.BlockSpec((rt, cout), lambda i: (i, 0))
    return pl.pallas_call(
        _pointwise_res_kernel,
        out_shape=out_shape,
        grid_spec=pltpu.PrefetchScalarGridSpec(
            num_scalar_prefetch=0, grid=grid,
            in_specs=[x_spec, w_spec, b_spec, r_spec],
            out_specs=o_spec),
        compiler_params=_cparams(),
    )(x2d, w, b2, residual)


# ---------------------------------------------------------------------------
# 3) Channel-attention core (per batch element)
# ---------------------------------------------------------------------------
def _attn_core_kernel(q_ref, k_ref, v_ref, t_ref, w1_ref, b1_ref, w2_ref, b2_ref, o_ref):
    num_heads = q_ref.shape[1]
    eps = 1e-12

    # L2-normalised channel-attention scores, one (c, c) map per head.
    scores = []
    for h in range(num_heads):
        qh = q_ref[0, h].astype(jnp.float32)                      # (c, S)
        kh = k_ref[0, h].astype(jnp.float32)
        qh = qh / jnp.maximum(jnp.sqrt(jnp.sum(qh * qh, axis=-1, keepdims=True)), eps)
        kh = kh / jnp.maximum(jnp.sqrt(jnp.sum(kh * kh, axis=-1, keepdims=True)), eps)
        s = jax.lax.dot_general(qh, kh, (((1,), (1,)), ((), ())),
                                preferred_element_type=jnp.float32)   # q @ k^T : (c, c)
        scores.append(s * t_ref[h])                               # temperature (SMEM scalar)

    # Talking-head mix 1 (head-mixing scalars live in SMEM), then softmax over last dim.
    probs = []
    for ho in range(num_heads):
        mix = jnp.zeros_like(scores[0]) + b1_ref[ho]
        for hi in range(num_heads):
            mix = mix + w1_ref[ho, hi] * scores[hi]
        mix = mix - jnp.max(mix, axis=-1, keepdims=True)
        e = jnp.exp(mix)
        probs.append(e / jnp.sum(e, axis=-1, keepdims=True))

    # Talking-head mix 2, then attn @ v per head.
    for ho in range(num_heads):
        attn = jnp.zeros_like(scores[0]) + b2_ref[ho]
        for hi in range(num_heads):
            attn = attn + w2_ref[ho, hi] * probs[hi]
        vh = v_ref[0, ho].astype(jnp.float32)                     # (c, S)
        o_ref[0, ho] = jnp.dot(attn, vh,
                               preferred_element_type=jnp.float32).astype(o_ref.dtype)


def _attn_core(q, k, v, temp, w1, b1, w2, b2):
    """q/k/v: (B, heads, c, S). Returns (B, heads, c, S)."""
    B, hd, c, S = q.shape
    blk = pl.BlockSpec((1, hd, c, S), lambda b: (b, 0, 0, 0))
    smem = pl.BlockSpec(memory_space=pltpu.MemorySpace.SMEM)
    return pl.pallas_call(
        _attn_core_kernel,
        out_shape=jax.ShapeDtypeStruct((B, hd, c, S), q.dtype),
        grid_spec=pltpu.PrefetchScalarGridSpec(
            num_scalar_prefetch=0,
            grid=(B,),
            in_specs=[blk, blk, blk, smem, smem, smem, smem, smem],
            out_specs=blk),
        compiler_params=_cparams(),
    )(q, k, v,
      temp.astype(jnp.float32), w1.astype(jnp.float32), b1.astype(jnp.float32),
      w2.astype(jnp.float32), b2.astype(jnp.float32))


# ---------------------------------------------------------------------------
# XLA helpers (pieces intentionally not lowered to Pallas)
# ---------------------------------------------------------------------------
def _depthwise_conv3x3_nhwc(x, w):
    # TODO(synk): 3x3 depthwise conv left to XLA; halo-exchange windowing has no clean
    # BlockSpec expression at these tiny spatial tiles.
    # x: (B, H, W, C), w: (3, 3, C)
    C = x.shape[-1]
    return jax.lax.conv_general_dilated(
        x, w.reshape(3, 3, 1, C),
        window_strides=(1, 1), padding=((1, 1), (1, 1)),
        dimension_numbers=("NHWC", "HWIO", "NHWC"),
        feature_group_count=C)


# ---------------------------------------------------------------------------
# Module wrappers (NHWC internally, NCHW at the boundary like PyTorch)
# ---------------------------------------------------------------------------
def attention_pallas(q_fea, k_fea, v_fea, params, num_heads, residual):
    """Restormer channel attention (NHWC in/out). Returns residual + project_out(attn)."""
    B, H, W, C = q_fea.shape
    S = H * W
    c = C // num_heads

    q = _depthwise_conv3x3_nhwc(q_fea, params["q_dw"])
    k = _depthwise_conv3x3_nhwc(k_fea, params["k_dw"])
    v = _depthwise_conv3x3_nhwc(v_fea, params["v_dw"])

    def to_heads(t):   # 'b (head c) h w -> b head c (h w)' starting from NHWC
        return jnp.transpose(t.reshape(B, S, C), (0, 2, 1)).reshape(B, num_heads, c, S)

    out = _attn_core(to_heads(q), to_heads(k), to_heads(v),
                     params["temperature"], params["th1_w"], params["th1_b"],
                     params["th2_w"], params["th2_b"])            # (B, heads, c, S)

    out = jnp.transpose(out.reshape(B, C, S), (0, 2, 1)).reshape(B * S, C)
    out = pointwise_conv(out, params["attn_proj_w"],
                         residual=residual.reshape(B * S, C))     # fused residual add
    return out.reshape(B, H, W, C)


def feedforward_pallas(x, params, hidden, residual):
    """Gated-Dconv FFN (NHWC in/out). Returns residual + project_out(gelu(x1)*x2)."""
    B, H, W, C = x.shape
    rows = B * H * W
    y = pointwise_conv(x.reshape(rows, C), params["ffn_in_w"])        # (rows, 2*hidden)
    y = _depthwise_conv3x3_nhwc(y.reshape(B, H, W, 2 * hidden), params["ffn_dw"])
    x1, x2 = y[..., :hidden], y[..., hidden:]
    # TODO(synk): exact erf-based GELU gate left in XLA (erf lowering in Mosaic not guaranteed).
    g = jax.nn.gelu(x1, approximate=False) * x2
    out = pointwise_conv(g.reshape(rows, hidden), params["ffn_out_w"],
                         residual=residual.reshape(rows, C))
    return out.reshape(B, H, W, C)


def transformer_block_pallas(key_fea, query_fea, value_fea, params, num_heads, hidden):
    """Restormer TransformerBlock forward (BiasFree LayerNorm, bias=False convs).

    key_fea/query_fea/value_fea: (B, C, H, W) float32 (PyTorch NCHW layout).
    """
    to_nhwc = lambda t: jnp.transpose(t, (0, 2, 3, 1))
    to_nchw = lambda t: jnp.transpose(t, (0, 3, 1, 2))
    k_in, q_in, v_in = to_nhwc(key_fea), to_nhwc(query_fea), to_nhwc(value_fea)

    nk = biasfree_layernorm(k_in, params["ln_key_w"])
    nq = biasfree_layernorm(q_in, params["ln_query_w"])
    nv = biasfree_layernorm(v_in, params["ln_value_w"])

    # The PyTorch block calls Attention(q_fea=norm_key(key), k_fea=norm_query(query),
    # v_fea=norm_value(value)); keep that exact wiring.  Residual: value + attn(...).
    x = attention_pallas(nk, nq, nv, params, num_heads, residual=v_in)

    n2 = biasfree_layernorm(x, params["ln2_w"])
    x = feedforward_pallas(n2, params, hidden, residual=x)            # x + ffn(norm2(x))
    return to_nchw(x)


# ---------------------------------------------------------------------------
# Pure-JAX reference (mirrors the PyTorch module op-for-op)
# ---------------------------------------------------------------------------
def transformer_block_reference(key_fea, query_fea, value_fea, p, num_heads, hidden):
    hp = jax.lax.Precision.HIGHEST

    def ln(x_nchw, w):
        B, C, H, W = x_nchw.shape
        x3 = jnp.transpose(x_nchw, (0, 2, 3, 1)).reshape(B, H * W, C)     # to_3d
        var = jnp.var(x3, axis=-1, keepdims=True)                          # unbiased=False
        y = x3 / jnp.sqrt(var + 1e-5) * w
        return jnp.transpose(y.reshape(B, H, W, C), (0, 3, 1, 2))          # to_4d

    def dwconv(x_nchw, w):
        y = _depthwise_conv3x3_nhwc(jnp.transpose(x_nchw, (0, 2, 3, 1)), w)
        return jnp.transpose(y, (0, 3, 1, 2))

    def pconv(x_nchw, w):
        return jnp.einsum("bchw,cd->bdhw", x_nchw, w, precision=hp)

    def l2n(t):
        return t / jnp.maximum(jnp.sqrt(jnp.sum(t * t, axis=-1, keepdims=True)), 1e-12)

    def attention(q_fea, k_fea, v_fea):
        B, C, H, W = q_fea.shape
        c = C // num_heads
        q = dwconv(q_fea, p["q_dw"]).reshape(B, num_heads, c, H * W)
        k = dwconv(k_fea, p["k_dw"]).reshape(B, num_heads, c, H * W)
        v = dwconv(v_fea, p["v_dw"]).reshape(B, num_heads, c, H * W)
        q, k = l2n(q), l2n(k)
        attn = jnp.einsum("bhcs,bhds->bhcd", q, k, precision=hp)
        attn = attn * p["temperature"][None, :, None, None]
        attn = jnp.einsum("oi,bicd->bocd", p["th1_w"], attn, precision=hp) \
            + p["th1_b"][None, :, None, None]
        attn = jax.nn.softmax(attn, axis=-1)
        attn = jnp.einsum("oi,bicd->bocd", p["th2_w"], attn, precision=hp) \
            + p["th2_b"][None, :, None, None]
        out = jnp.einsum("bhcd,bhds->bhcs", attn, v, precision=hp).reshape(B, C, H, W)
        return pconv(out, p["attn_proj_w"])

    def ffn(x):
        y = pconv(x, p["ffn_in_w"])
        y = dwconv(y, p["ffn_dw"])
        x1, x2 = y[:, :hidden], y[:, hidden:]
        g = jax.nn.gelu(x1, approximate=False) * x2
        return pconv(g, p["ffn_out_w"])

    x = value_fea + attention(ln(key_fea, p["ln_key_w"]),
                              ln(query_fea, p["ln_query_w"]),
                              ln(value_fea, p["ln_value_w"]))
    x = x + ffn(ln(x, p["ln2_w"]))
    return x


# ---------------------------------------------------------------------------
# Deterministic parameter init + smoke test
# ---------------------------------------------------------------------------
def init_params(rng, dim, num_heads, hidden):
    ks = jax.random.split(rng, 16)
    nrm = lambda k, shape, s: s * jax.random.normal(k, shape, jnp.float32)
    return {
        # LayerNorm weights (PyTorch init is ones; perturb so the weight path is exercised)
        "ln_key_w": 1.0 + 0.1 * jax.random.normal(ks[0], (dim,), jnp.float32),
        "ln_query_w": 1.0 + 0.1 * jax.random.normal(ks[1], (dim,), jnp.float32),
        "ln_value_w": 1.0 + 0.1 * jax.random.normal(ks[2], (dim,), jnp.float32),
        "ln2_w": 1.0 + 0.1 * jax.random.normal(ks[3], (dim,), jnp.float32),
        # depthwise 3x3 kernels, (3, 3, C)
        "q_dw": nrm(ks[4], (3, 3, dim), 0.2),
        "k_dw": nrm(ks[5], (3, 3, dim), 0.2),
        "v_dw": nrm(ks[6], (3, 3, dim), 0.2),
        # attention params
        "temperature": jnp.ones((num_heads,), jnp.float32),
        "th1_w": nrm(ks[7], (num_heads, num_heads), 0.5),
        "th1_b": nrm(ks[8], (num_heads,), 0.1),
        "th2_w": nrm(ks[9], (num_heads, num_heads), 0.5),
        "th2_b": nrm(ks[10], (num_heads,), 0.1),
        "attn_proj_w": nrm(ks[11], (dim, dim), 1.0 / (dim ** 0.5)),
        # FFN params (bias=False)
        "ffn_in_w": nrm(ks[12], (dim, 2 * hidden), 1.0 / (dim ** 0.5)),
        "ffn_dw": nrm(ks[13], (3, 3, 2 * hidden), 0.2),
        "ffn_out_w": nrm(ks[14], (hidden, dim), 1.0 / (hidden ** 0.5)),
    }


if __name__ == "__main__":
    rng = jax.random.PRNGKey(0)
    B, dim, H, W = 2, 16, 16, 16
    num_heads = 2
    ffn_expansion_factor = 2.0
    hidden = int(dim * ffn_expansion_factor)

    k0, k1, k2, k3 = jax.random.split(rng, 4)
    key_fea = jax.random.normal(k0, (B, dim, H, W), jnp.float32)
    query_fea = jax.random.normal(k1, (B, dim, H, W), jnp.float32)
    value_fea = jax.random.normal(k2, (B, dim, H, W), jnp.float32)
    params = init_params(k3, dim, num_heads, hidden)

    out = transformer_block_pallas(key_fea, query_fea, value_fea, params, num_heads, hidden)
    out = jax.block_until_ready(out)

    ref = transformer_block_reference(key_fea, query_fea, value_fea, params, num_heads, hidden)
    assert out.shape == value_fea.shape and out.dtype == value_fea.dtype
    err = float(jnp.max(jnp.abs(out - ref)))
    assert err < 5e-3, f"mismatch vs reference: max abs err = {err}"

    print("KERNEL_OK")
</pallas_src>

<mosaic_0001>
module attributes {stable_mosaic.version = 11 : i64} {
  func.func @_ln_biasfree_kernel(%arg0: i32, %arg1: memref<64x128xf32, #tpu.memory_space<vmem>>, %arg2: memref<1x128xf32, #tpu.memory_space<vmem>>, %arg3: memref<128x8xf32, #tpu.memory_space<vmem>>, %arg4: memref<8x128xf32, #tpu.memory_space<vmem>>, %arg5: memref<64x128xf32, #tpu.memory_space<vmem>>) attributes {dimension_semantics = [#tpu.dimension_semantics<parallel>], iteration_bounds = array<i64: 1>, scalar_prefetch = 0 : i64, scratch_operands = 0 : i64, tpu.core_type = #tpu.core_type<tc>, window_params = [{transform_indices = @transform_0, window_bounds = array<i64: 64, 128>}, {pipeline_mode = #tpu.pipeline_mode<synchronous>, transform_indices = @transform_1, window_bounds = array<i64: 1, 128>}, {pipeline_mode = #tpu.pipeline_mode<synchronous>, transform_indices = @transform_2, window_bounds = array<i64: 128, 8>}, {pipeline_mode = #tpu.pipeline_mode<synchronous>, transform_indices = @transform_3, window_bounds = array<i64: 8, 128>}, {transform_indices = @transform_4, window_bounds = array<i64: 64, 128>}]} {
    %c0 = arith.constant 0 : index
    %c0_0 = arith.constant 0 : index
    %0 = vector.load %arg1[%c0, %c0_0] : memref<64x128xf32, #tpu.memory_space<vmem>>, vector<64x128xf32>
    %c0_1 = arith.constant 0 : index
    %c0_2 = arith.constant 0 : index
    %1 = vector.load %arg3[%c0_1, %c0_2] : memref<128x8xf32, #tpu.memory_space<vmem>>, vector<128x8xf32>
    %cst = arith.constant dense<0.000000e+00> : vector<64x8xf32>
    %2 = tpu.matmul %0, %1, %cst {dimension_numbers = #tpu.dot_dimension_numbers<[1], [0], [0], [1], [0, 0, 1, 1], [], []>} : vector<64x128xf32>, vector<128x8xf32>, vector<64x8xf32> -> vector<64x8xf32>
    %3 = arith.mulf %0, %0 : vector<64x128xf32>
    %cst_3 = arith.constant dense<0.000000e+00> : vector<64x8xf32>
    %4 = tpu.matmul %3, %1, %cst_3 {dimension_numbers = #tpu.dot_dimension_numbers<[1], [0], [0], [1], [0, 0, 1, 1], [], []>} : vector<64x128xf32>, vector<128x8xf32>, vector<64x8xf32> -> vector<64x8xf32>
    %cst_4 = arith.constant 6.250000e-02 : f32
    %5 = vector.broadcast %cst_4 : f32 to vector<64x8xf32>
    %6 = arith.mulf %2, %5 : vector<64x8xf32>
    %cst_5 = arith.constant 6.250000e-02 : f32
    %7 = vector.broadcast %cst_5 : f32 to vector<64x8xf32>
    %8 = arith.mulf %4, %7 : vector<64x8xf32>
    %9 = arith.mulf %6, %6 : vector<64x8xf32>
    %10 = arith.subf %8, %9 : vector<64x8xf32>
    %cst_6 = arith.constant 9.99999974E-6 : f32
    %11 = vector.broadcast %cst_6 : f32 to vector<64x8xf32>
    %12 = arith.addf %10, %11 : vector<64x8xf32>
    %13 = math.rsqrt %12 : vector<64x8xf32>
    %c0_7 = arith.constant 0 : index
    %c0_8 = arith.constant 0 : index
    %14 = vector.load %arg4[%c0_7, %c0_8] : memref<8x128xf32, #tpu.memory_space<vmem>>, vector<8x128xf32>
    %cst_9 = arith.constant dense<0.000000e+00> : vector<64x128xf32>
    %15 = tpu.matmul %13, %14, %cst_9 {dimension_numbers = #tpu.dot_dimension_numbers<[1], [0], [0], [1], [0, 0, 1, 1], [], []>} : vector<64x8xf32>, vector<8x128xf32>, vector<64x128xf32> -> vector<64x128xf32>
    %16 = arith.mulf %0, %15 : vector<64x128xf32>
    %c0_10 = arith.constant 0 : index
    %c0_11 = arith.constant 0 : index
    %17 = vector.load %arg2[%c0_10, %c0_11] : memref<1x128xf32, #tpu.memory_space<vmem>>, vector<1x128xf32>
    %18 = vector.broadcast %17 : vector<1x128xf32> to vector<64x128xf32>
    %19 = arith.mulf %16, %18 : vector<64x128xf32>
    %c0_12 = arith.constant 0 : index
    %c0_13 = arith.constant 0 : index
    %20 = vector.load %arg5[%c0_12, %c0_13] : memref<64x128xf32, #tpu.memory_space<vmem>>, vector<64x128xf32>
    tpu.vector_store %arg5[%c0_12, %c0_13], %19 {strides = array<i32>} : memref<64x128xf32, #tpu.memory_space<vmem>>, vector<64x128xf32>,
    return
  }
  func.func @transform_0(%arg0: i32) -> (i32, i32) {
    %c0_i32 = arith.constant 0 : i32
    %c0_i32_0 = arith.constant 0 : i32
    return %arg0, %c0_i32 : i32, i32
  }
  func.func @transform_1(%arg0: i32) -> (i32, i32) {
    %c0_i32 = arith.constant 0 : i32
    %c0_i32_0 = arith.constant 0 : i32
    %c0_i32_1 = arith.constant 0 : i32
    return %c0_i32, %c0_i32_0 : i32, i32
  }
  func.func @transform_2(%arg0: i32) -> (i32, i32) {
    %c0_i32 = arith.constant 0 : i32
    %c0_i32_0 = arith.constant 0 : i32
    %c0_i32_1 = arith.constant 0 : i32
    return %c0_i32, %c0_i32_0 : i32, i32
  }
  func.func @transform_3(%arg0: i32) -> (i32, i32) {
    %c0_i32 = arith.constant 0 : i32
    %c0_i32_0 = arith.constant 0 : i32
    %c0_i32_1 = arith.constant 0 : i32
    return %c0_i32, %c0_i32_0 : i32, i32
  }
  func.func @transform_4(%arg0: i32) -> (i32, i32) {
    %c0_i32 = arith.constant 0 : i32
    %c0_i32_0 = arith.constant 0 : i32
    return %arg0, %c0_i32 : i32, i32
  }
}

</mosaic_0001>

<llo_original>
// kernel: tpu_custom_call.1
$region0: #{tpu_custom_call.1}
  #allocation0 [shape = 'u32[]', space=smem, size = 0x4, offset = 0x4, fixed_abs, tag = 'smem constant byte address 0x4 - core index']
  #allocation1 [shape = 'u32[144,128]{1,0:T(1,128)}', space=vmem, size = 0x12000, scoped, tag = 'internal scratch']
  %s0 = inlined_call_operand.vmem [shape: f32[64,128], index: 0, kind: input, shape index: {}]
  %s1 = inlined_call_operand.vmem [shape: f32[1,128], index: 1, kind: input, shape index: {}]
  %s2 = inlined_call_operand.vmem [shape: f32[128,8], index: 2, kind: input, shape index: {}]
  %s3 = inlined_call_operand.vmem [shape: f32[8,128], index: 3, kind: input, shape index: {}]
  %s4 = inlined_call_operand.hbm [shape: f32[64,128], index: 4, kind: output, shape index: {}]
  %s5 = sld [smem:[#allocation0]]
  $region26: #{tpu_custom_call.1} parent=0
    _
  %s7 = ssub.s32 1, %s5
  %s8 = scalar_select 0, %s7, %s5
  $region1: #{tpu_custom_call.1} parent=0
    #allocation2 [shape = 'u8[32768]{0}', space=vmem, size = 0x8000, scoped, tag = 'output window, operand 0, single buffered']
    #allocation3 [shape = 's32[1]{0}', space=sflag, size = 0x4, scoped, tag = 'scoped memory for tpu_custom_call.1']
    %9 = vsyncpa [#allocation3], 0
    // Predicated region
    $region2: #{tpu_custom_call.1} parent=1 // pred_check
      _
    $region3: #{tpu_custom_call.1} parent=1 // pred_check_branch
      %11 = sbr.rel (0) target = $region5
    $region4: #{tpu_custom_call.1} parent=1 // pred_region
      _
    $region5: #{tpu_custom_call.1} parent=1 // pred_fallthru
      _
    // Predicated region
    $region6: #{tpu_custom_call.1} parent=1 // pred_check
      _
    $region7: #{tpu_custom_call.1} parent=1 // pred_check_branch
      %13 = sbr.rel (0) target = $region9
    $region8: #{tpu_custom_call.1} parent=1 // pred_region
      _
    $region9: #{tpu_custom_call.1} parent=1 // pred_fallthru
      _
    // Predicated region
    $region10: #{tpu_custom_call.1} parent=1 // pred_check
      _
    $region11: #{tpu_custom_call.1} parent=1 // pred_check_branch
      %15 = sbr.rel (0) target = $region13
    $region12: #{tpu_custom_call.1} parent=1 // pred_region
      _
    $region13: #{tpu_custom_call.1} parent=1 // pred_fallthru
      _
    // Predicated region
    $region14: #{tpu_custom_call.1} parent=1 // pred_check
      _
    $region15: #{tpu_custom_call.1} parent=1 // pred_check_branch
      %17 = sbr.rel (0) target = $region17
    $region16: #{tpu_custom_call.1} parent=1 // pred_region
      _
    $region17: #{tpu_custom_call.1} parent=1 // pred_fallthru
      _
    %v18 = vld [vmem:[%s0] sm:$0xff]
    %v19 = vld [vmem:[%s0 + $0x8] sm:$0xff]
    %v20 = vld [vmem:[%s0 + $0x10] sm:$0xff]
    %v21 = vld [vmem:[%s0 + $0x18] sm:$0xff]
    %v22 = vld [vmem:[%s0 + $0x20] sm:$0xff]
    %v23 = vld [vmem:[%s0 + $0x28] sm:$0xff]
    %v24 = vld [vmem:[%s0 + $0x30] sm:$0xff]
    %v25 = vld [vmem:[%s0 + $0x38] sm:$0xff]
    %v26 = vld [vmem:[%s2] sm:$0xff]
    %v27 = vld [vmem:[%s2 + $0x8] sm:$0xff]
    %v28 = vld [vmem:[%s2 + $0x10] sm:$0xff]
    %v29 = vld [vmem:[%s2 + $0x18] sm:$0xff]
    %v30 = vld [vmem:[%s2 + $0x20] sm:$0xff]
    %v31 = vld [vmem:[%s2 + $0x28] sm:$0xff]
    %v32 = vld [vmem:[%s2 + $0x30] sm:$0xff]
    %v33 = vld [vmem:[%s2 + $0x38] sm:$0xff]
    %v34 = vld [vmem:[%s2 + $0x40] sm:$0xff]
    %v35 = vld [vmem:[%s2 + $0x48] sm:$0xff]
    %v36 = vld [vmem:[%s2 + $0x50] sm:$0xff]
    %v37 = vld [vmem:[%s2 + $0x58] sm:$0xff]
    %v38 = vld [vmem:[%s2 + $0x60] sm:$0xff]
    %v39 = vld [vmem:[%s2 + $0x68] sm:$0xff]
    %v40 = vld [vmem:[%s2 + $0x70] sm:$0xff]
    %v41 = vld [vmem:[%s2 + $0x78] sm:$0xff]
    %42 = vmatprep.subr.mxu0 0.0
    %43 = vmatpush1.msra.mxu0 %v26
    %44 = vmatprep.subr.mxu0 0.0
    %45 = vmatpush1.msra.mxu0 %v27
    %46 = vmatprep.subr.mxu0 0.0
    %47 = vmatpush1.msra.mxu0 %v28
    %48 = vmatprep.subr.mxu0 0.0
    %49 = vmatpush1.msra.mxu0 %v29
    %50 = vmatprep.subr.mxu0 0.0
    %51 = vmatpush1.msra.mxu0 %v30
    %52 = vmatprep.subr.mxu0 0.0
    %53 = vmatpush1.msra.mxu0 %v31
    %54 = vmatprep.subr.mxu0 0.0
    %55 = vmatpush1.msra.mxu0 %v32
    %56 = vmatprep.subr.mxu0 0.0
    %57 = vmatpush1.msra.mxu0 %v33
    %58 = vmatprep.subr.mxu0 0.0
    %59 = vmatpush1.msra.mxu0 %v34
    %60 = vmatprep.subr.mxu0 0.0
    %61 = vmatpush1.msra.mxu0 %v35
    %62 = vmatprep.subr.mxu0 0.0
    %63 = vmatpush1.msra.mxu0 %v36
    %64 = vmatprep.subr.mxu0 0.0
    %65 = vmatpush1.msra.mxu0 %v37
    %66 = vmatprep.subr.mxu0 0.0
    %67 = vmatpush1.msra.mxu0 %v38
    %68 = vmatprep.subr.mxu0 0.0
    %69 = vmatpush1.msra.mxu0 %v39
    %70 = vmatprep.subr.mxu0 0.0
    %71 = vmatpush1.msra.mxu0 %v40
    %72 = vmatprep.subr.mxu0 0.0
    %73 = vmatpush1.msra.mxu0 %v41
    %74 = vmatprep.subr.mxu0 0.0
    %75 = vmatpush1.msra.mxu0 0.0
    %76 = vmatprep.subr.mxu0 0.0
    %77 = vmatpush1.msra.mxu0 0.0
    %78 = vmatprep.subr.mxu0 0.0
    %79 = vmatpush1.msra.mxu0 0.0
    %80 = vmatprep.subr.mxu0 0.0
    %81 = vmatpush1.msra.mxu0 0.0
    %82 = vmatprep.subr.mxu0 0.0
    %83 = vmatpush1.msra.mxu0 0.0
    %84 = vmatprep.subr.mxu0 0.0
    %85 = vmatpush1.msra.mxu0 0.0
    %86 = vmatprep.subr.mxu0 0.0
    %87 = vmatpush1.msra.mxu0 0.0
    %88 = vmatprep.subr.mxu0 0.0
    %89 = vmatpush1.msra.mxu0 0.0
    %90 = vmatprep.subr.mxu0 0.0
    %91 = vmatpush1.msra.mxu0 0.0
    %92 = vmatprep.subr.mxu0 0.0
    %93 = vmatpush1.msra.mxu0 0.0
    %94 = vmatprep.subr.mxu0 0.0
    %95 = vmatpush1.msra.mxu0 0.0
    %96 = vmatprep.subr.mxu0 0.0
    %97 = vmatpush1.msra.mxu0 0.0
    %98 = vmatprep.subr.mxu0 0.0
    %99 = vmatpush1.msra.mxu0 0.0
    %100 = vmatprep.subr.mxu0 0.0
    %101 = vmatpush1.msra.mxu0 0.0
    %102 = vmatprep.subr.mxu0 0.0
    %103 = vmatpush1.msra.mxu0 0.0
    %104 = vmatprep.subr.mxu0 0.0
    %105 = vmatpush1.msra.mxu0 0.0
    %106 = vmatprep.mubr.f32.mxu0 0.0
    %107 = vmatmul.mubr.f32.gmra.mrb[0].mxu0 %v18
    %v108 = vpop.f32.mrb[0].mxu0
    %v109 = vadd.f32 0.0, %v108
    %v110 = vpop.f32.mrb[0].mxu0
    %111 = vmatprep.mubr.f32.mxu0 0.0
    %112 = vmatmul.mubr.f32.gmra.mrb[0].mxu0 %v19
    %v113 = vpop.f32.mrb[0].mxu0
    %v114 = vadd.f32 0.0, %v113
    %v115 = vpop.f32.mrb[0].mxu0
    %116 = vmatprep.mubr.f32.mxu0 0.0
    %117 = vmatmul.mubr.f32.gmra.mrb[0].mxu0 %v20
    %v118 = vpop.f32.mrb[0].mxu0
    %v119 = vadd.f32 0.0, %v118
    %v120 = vpop.f32.mrb[0].mxu0
    %121 = vmatprep.mubr.f32.mxu0 0.0
    %122 = vmatmul.mubr.f32.gmra.mrb[0].mxu0 %v21
    %v123 = vpop.f32.mrb[0].mxu0
    %v124 = vadd.f32 0.0, %v123
    %v125 = vpop.f32.mrb[0].mxu0
    %126 = vmatprep.mubr.f32.mxu0 0.0
    %127 = vmatmul.mubr.f32.gmra.mrb[0].mxu0 %v22
    %v128 = vpop.f32.mrb[0].mxu0
    %v129 = vadd.f32 0.0, %v128
    %v130 = vpop.f32.mrb[0].mxu0
    %131 = vmatprep.mubr.f32.mxu0 0.0
    %132 = vmatmul.mubr.f32.gmra.mrb[0].mxu0 %v23
    %v133 = vpop.f32.mrb[0].mxu0
    %v134 = vadd.f32 0.0, %v133
    %v135 = vpop.f32.mrb[0].mxu0
    %136 = vmatprep.mubr.f32.mxu0 0.0
    %137 = vmatmul.mubr.f32.gmra.mrb[0].mxu0 %v24
    %v138 = vpop.f32.mrb[0].mxu0
    %v139 = vadd.f32 0.0, %v138
    %v140 = vpop.f32.mrb[0].mxu0
    %141 = vmatprep.mubr.f32.mxu0 0.0
    %142 = vmatmul.mubr.f32.gmra.mrb[0].mxu0 %v25
    %v143 = vpop.f32.mrb[0].mxu0
    %v144 = vadd.f32 0.0, %v143
    %v145 = vpop.f32.mrb[0].mxu0
    %146 = vdwg.mxu0
    %v147 = vmul.f32 %v18, %v18
    %v148 = vmul.f32 %v19, %v19
    %v149 = vmul.f32 %v20, %v20
    %v150 = vmul.f32 %v21, %v21
    %v151 = vmul.f32 %v22, %v22
    %v152 = vmul.f32 %v23, %v23
    %v153 = vmul.f32 %v24, %v24
    %v154 = vmul.f32 %v25, %v25
    %155 = vmatprep.subr.mxu0 0.0
    %156 = vmatpush1.msra.mxu0 %v26
    %157 = vmatprep.subr.mxu0 0.0
    %158 = vmatpush1.msra.mxu0 %v27
    %159 = vmatprep.subr.mxu0 0.0
    %160 = vmatpush1.msra.mxu0 %v28
    %161 = vmatprep.subr.mxu0 0.0
    %162 = vmatpush1.msra.mxu0 %v29
    %163 = vmatprep.subr.mxu0 0.0
    %164 = vmatpush1.msra.mxu0 %v30
    %165 = vmatprep.subr.mxu0 0.0
    %166 = vmatpush1.msra.mxu0 %v31
    %167 = vmatprep.subr.mxu0 0.0
    %168 = vmatpush1.msra.mxu0 %v32
    %169 = vmatprep.subr.mxu0 0.0
    %170 = vmatpush1.msra.mxu0 %v33
    %171 = vmatprep.subr.mxu0 0.0
    %172 = vmatpush1.msra.mxu0 %v34
    %173 = vmatprep.subr.mxu0 0.0
    %174 = vmatpush1.msra.mxu0 %v35
    %175 = vmatprep.subr.mxu0 0.0
    %176 = vmatpush1.msra.mxu0 %v36
    %177 = vmatprep.subr.mxu0 0.0
    %178 = vmatpush1.msra.mxu0 %v37
    %179 = vmatprep.subr.mxu0 0.0
    %180 = vmatpush1.msra.mxu0 %v38
    %181 = vmatprep.subr.mxu0 0.0
    %182 = vmatpush1.msra.mxu0 %v39
    %183 = vmatprep.subr.mxu0 0.0
    %184 = vmatpush1.msra.mxu0 %v40
    %185 = vmatprep.subr.mxu0 0.0
    %186 = vmatpush1.msra.mxu0 %v41
    %187 = vmatprep.subr.mxu0 0.0
    %188 = vmatpush1.msra.mxu0 0.0
    %189 = vmatprep.subr.mxu0 0.0
    %190 = vmatpush1.msra.mxu0 0.0
    %191 = vmatprep.subr.mxu0 0.0
    %192 = vmatpush1.msra.mxu0 0.0
    %193 = vmatprep.subr.mxu0 0.0
    %194 = vmatpush1.msra.mxu0 0.0
    %195 = vmatprep.subr.mxu0 0.0
    %196 = vmatpush1.msra.mxu0 0.0
    %197 = vmatprep.subr.mxu0 0.0
    %198 = vmatpush1.msra.mxu0 0.0
    %199 = vmatprep.subr.mxu0 0.0
    %200 = vmatpush1.msra.mxu0 0.0
    %201 = vmatprep.subr.mxu0 0.0
    %202 = vmatpush1.msra.mxu0 0.0
    %203 = vmatprep.subr.mxu0 0.0
    %204 = vmatpush1.msra.mxu0 0.0
    %205 = vmatprep.subr.mxu0 0.0
    %206 = vmatpush1.msra.mxu0 0.0
    %207 = vmatprep.subr.mxu0 0.0
    %208 = vmatpush1.msra.mxu0 0.0
    %209 = vmatprep.subr.mxu0 0.0
    %210 = vmatpush1.msra.mxu0 0.0
    %211 = vmatprep.subr.mxu0 0.0
    %212 = vmatpush1.msra.mxu0 0.0
    %213 = vmatprep.subr.mxu0 0.0
    %214 = vmatpush1.msra.mxu0 0.0
    %215 = vmatprep.subr.mxu0 0.0
    %216 = vmatpush1.msra.mxu0 0.0
    %217 = vmatprep.subr.mxu0 0.0
    %218 = vmatpush1.msra.mxu0 0.0
    %219 = vmatprep.mubr.f32.mxu0 0.0
    %220 = vmatmul.mubr.f32.gmra.mrb[0].mxu0 %v147
    %v221 = vpop.f32.mrb[0].mxu0
    %v222 = vadd.f32 0.0, %v221
    %v223 = vpop.f32.mrb[0].mxu0
    %224 = vmatprep.mubr.f32.mxu0 0.0
    %225 = vmatmul.mubr.f32.gmra.mrb[0].mxu0 %v148
    %v226 = vpop.f32.mrb[0].mxu0
    %v227 = vadd.f32 0.0, %v226
    %v228 = vpop.f32.mrb[0].mxu0
    %229 = vmatprep.mubr.f32.mxu0 0.0
    %230 = vmatmul.mubr.f32.gmra.mrb[0].mxu0 %v149
    %v231 = vpop.f32.mrb[0].mxu0
    %v232 = vadd.f32 0.0, %v231
    %v233 = vpop.f32.mrb[0].mxu0
    %234 = vmatprep.mubr.f32.mxu0 0.0
    %235 = vmatmul.mubr.f32.gmra.mrb[0].mxu0 %v150
    %v236 = vpop.f32.mrb[0].mxu0
    %v237 = vadd.f32 0.0, %v236
    %v238 = vpop.f32.mrb[0].mxu0
    %239 = vmatprep.mubr.f32.mxu0 0.0
    %240 = vmatmul.mubr.f32.gmra.mrb[0].mxu0 %v151
    %v241 = vpop.f32.mrb[0].mxu0
    %v242 = vadd.f32 0.0, %v241
    %v243 = vpop.f32.mrb[0].mxu0
    %244 = vmatprep.mubr.f32.mxu0 0.0
    %245 = vmatmul.mubr.f32.gmra.mrb[0].mxu0 %v152
    %v246 = vpop.f32.mrb[0].mxu0
    %v247 = vadd.f32 0.0, %v246
    %v248 = vpop.f32.mrb[0].mxu0
    %249 = vmatprep.mubr.f32.mxu0 0.0
    %250 = vmatmul.mubr.f32.gmra.mrb[0].mxu0 %v153
    %v251 = vpop.f32.mrb[0].mxu0
    %v252 = vadd.f32 0.0, %v251
    %v253 = vpop.f32.mrb[0].mxu0
    %254 = vmatprep.mubr.f32.mxu0 0.0
    %255 = vmatmul.mubr.f32.gmra.mrb[0].mxu0 %v154
    %v256 = vpop.f32.mrb[0].mxu0
    %v257 = vadd.f32 0.0, %v256
    %v258 = vpop.f32.mrb[0].mxu0
    %259 = vdwg.mxu0
    %v260 = vmul.f32 %v109, 0.0625
    %v261 = vmul.f32 %v114, 0.0625
    %v262 = vmul.f32 %v119, 0.0625
    %v263 = vmul.f32 %v124, 0.0625
    %v264 = vmul.f32 %v129, 0.0625
    %v265 = vmul.f32 %v134, 0.0625
    %v266 = vmul.f32 %v139, 0.0625
    %v267 = vmul.f32 %v144, 0.0625
    %v268 = vmul.f32 %v222, 0.0625
    %v269 = vmul.f32 %v227, 0.0625
    %v270 = vmul.f32 %v232, 0.0625
    %v271 = vmul.f32 %v237, 0.0625
    %v272 = vmul.f32 %v242, 0.0625
    %v273 = vmul.f32 %v247, 0.0625
    %v274 = vmul.f32 %v252, 0.0625
    %v275 = vmul.f32 %v257, 0.0625
    %v276 = vmul.f32 %v260, %v260
    %v277 = vmul.f32 %v261, %v261
    %v278 = vmul.f32 %v262, %v262
    %v279 = vmul.f32 %v263, %v263
    %v280 = vmul.f32 %v264, %v264
    %v281 = vmul.f32 %v265, %v265
    %v282 = vmul.f32 %v266, %v266
    %v283 = vmul.f32 %v267, %v267
    %v284 = vsub.f32 %v268, %v276
    %v285 = vsub.f32 %v269, %v277
    %v286 = vsub.f32 %v270, %v278
    %v287 = vsub.f32 %v271, %v279
    %v288 = vsub.f32 %v272, %v280
    %v289 = vsub.f32 %v273, %v281
    %v290 = vsub.f32 %v274, %v282
    %v291 = vsub.f32 %v275, %v283
    %v292 = vadd.f32 %v284, 1e-05
    %v293 = vadd.f32 %v285, 1e-05
    %v294 = vadd.f32 %v286, 1e-05
    %v295 = vadd.f32 %v287, 1e-05
    %v296 = vadd.f32 %v288, 1e-05
    %v297 = vadd.f32 %v289, 1e-05
    %v298 = vadd.f32 %v290, 1e-05
    %v299 = vadd.f32 %v291, 1e-05
    %v300 = vrsqrt.pop %v292
    %v301 = vrsqrt.pop %v293
    %v302 = vrsqrt.pop %v294
    %v303 = vrsqrt.pop %v295
    %v304 = vrsqrt.pop %v296
    %v305 = vrsqrt.pop %v297
    %v306 = vrsqrt.pop %v298
    %v307 = vrsqrt.pop %v299
    %v308 = vld [vmem:[%s3] sm:$0xff]
    %vm309 = vcmask 64512
    %v311 = vsel %vm309, %v300, 0
    %v314 = vsel %vm309, %v301, 0
    %v317 = vsel %vm309, %v302, 0
    %v320 = vsel %vm309, %v303, 0
    %v323 = vsel %vm309, %v304, 0
    %v326 = vsel %vm309, %v305, 0
    %v329 = vsel %vm309, %v306, 0
    %v332 = vsel %vm309, %v307, 0
    %334 = vmatprep.subr.mxu0 0.0
    %335 = vmatpush1.msra.mxu0 %v308
    %336 = vmatprep.subr.mxu0 0.0
    %337 = vmatpush1.msra.mxu0 0.0
    %338 = vmatprep.subr.mxu0 0.0
    %339 = vmatpush1.msra.mxu0 0.0
    %340 = vmatprep.subr.mxu0 0.0
    %341 = vmatpush1.msra.mxu0 0.0
    %342 = vmatprep.subr.mxu0 0.0
    %343 = vmatpush1.msra.mxu0 0.0
    %344 = vmatprep.subr.mxu0 0.0
    %345 = vmatpush1.msra.mxu0 0.0
    %346 = vmatprep.subr.mxu0 0.0
    %347 = vmatpush1.msra.mxu0 0.0
    %348 = vmatprep.subr.mxu0 0.0
    %349 = vmatpush1.msra.mxu0 0.0
    %350 = vmatprep.subr.mxu0 0.0
    %351 = vmatpush1.msra.mxu0 0.0
    %352 = vmatprep.subr.mxu0 0.0
    %353 = vmatpush1.msra.mxu0 0.0
    %354 = vmatprep.subr.mxu0 0.0
    %355 = vmatpush1.msra.mxu0 0.0
    %356 = vmatprep.subr.mxu0 0.0
    %357 = vmatpush1.msra.mxu0 0.0
    %358 = vmatprep.subr.mxu0 0.0
    %359 = vmatpush1.msra.mxu0 0.0
    %360 = vmatprep.subr.mxu0 0.0
    %361 = vmatpush1.msra.mxu0 0.0
    %362 = vmatprep.subr.mxu0 0.0
    %363 = vmatpush1.msra.mxu0 0.0
    %364 = vmatprep.subr.mxu0 0.0
    %365 = vmatpush1.msra.mxu0 0.0
    %366 = vmatprep.subr.mxu0 0.0
    %367 = vmatpush1.msra.mxu0 0.0
    %368 = vmatprep.subr.mxu0 0.0
    %369 = vmatpush1.msra.mxu0 0.0
    %370 = vmatprep.subr.mxu0 0.0
    %371 = vmatpush1.msra.mxu0 0.0
    %372 = vmatprep.subr.mxu0 0.0
    %373 = vmatpush1.msra.mxu0 0.0
    %374 = vmatprep.subr.mxu0 0.0
    %375 = vmatpush1.msra.mxu0 0.0
    %376 = vmatprep.subr.mxu0 0.0
    %377 = vmatpush1.msra.mxu0 0.0
    %378 = vmatprep.subr.mxu0 0.0
    %379 = vmatpush1.msra.mxu0 0.0
    %380 = vmatprep.subr.mxu0 0.0
    %381 = vmatpush1.msra.mxu0 0.0
    %382 = vmatprep.subr.mxu0 0.0
    %383 = vmatpush1.msra.mxu0 0.0
    %384 = vmatprep.subr.mxu0 0.0
    %385 = vmatpush1.msra.mxu0 0.0
    %386 = vmatprep.subr.mxu0 0.0
    %387 = vmatpush1.msra.mxu0 0.0
    %388 = vmatprep.subr.mxu0 0.0
    %389 = vmatpush1.msra.mxu0 0.0
    %390 = vmatprep.subr.mxu0 0.0
    %391 = vmatpush1.msra.mxu0 0.0
    %392 = vmatprep.subr.mxu0 0.0
    %393 = vmatpush1.msra.mxu0 0.0
    %394 = vmatprep.subr.mxu0 0.0
    %395 = vmatpush1.msra.mxu0 0.0
    %396 = vmatprep.subr.mxu0 0.0
    %397 = vmatpush1.msra.mxu0 0.0
    %398 = vmatprep.mubr.f32.mxu0 0.0
    %399 = vmatmul.mubr.f32.gmra.mrb[0].mxu0 %v311
    %v400 = vpop.f32.mrb[0].mxu0
    %v401 = vadd.f32 0.0, %v400
    %v402 = vpop.f32.mrb[0].mxu0
    %403 = vmatprep.mubr.f32.mxu0 0.0
    %404 = vmatmul.mubr.f32.gmra.mrb[0].mxu0 %v314
    %v405 = vpop.f32.mrb[0].mxu0
    %v406 = vadd.f32 0.0, %v405
    %v407 = vpop.f32.mrb[0].mxu0
    %408 = vmatprep.mubr.f32.mxu0 0.0
    %409 = vmatmul.mubr.f32.gmra.mrb[0].mxu0 %v317
    %v410 = vpop.f32.mrb[0].mxu0
    %v411 = vadd.f32 0.0, %v410
    %v412 = vpop.f32.mrb[0].mxu0
    %413 = vmatprep.mubr.f32.mxu0 0.0
    %414 = vmatmul.mubr.f32.gmra.mrb[0].mxu0 %v320
    %v415 = vpop.f32.mrb[0].mxu0
    %v416 = vadd.f32 0.0, %v415
    %v417 = vpop.f32.mrb[0].mxu0
    %418 = vmatprep.mubr.f32.mxu0 0.0
    %419 = vmatmul.mubr.f32.gmra.mrb[0].mxu0 %v323
    %v420 = vpop.f32.mrb[0].mxu0
    %v421 = vadd.f32 0.0, %v420
    %v422 = vpop.f32.mrb[0].mxu0
    %423 = vmatprep.mubr.f32.mxu0 0.0
    %424 = vmatmul.mubr.f32.gmra.mrb[0].mxu0 %v326
    %v425 = vpop.f32.mrb[0].mxu0
    %v426 = vadd.f32 0.0, %v425
    %v427 = vpop.f32.mrb[0].mxu0
    %428 = vmatprep.mubr.f32.mxu0 0.0
    %429 = vmatmul.mubr.f32.gmra.mrb[0].mxu0 %v329
    %v430 = vpop.f32.mrb[0].mxu0
    %v431 = vadd.f32 0.0, %v430
    %v432 = vpop.f32.mrb[0].mxu0
    %433 = vmatprep.mubr.f32.mxu0 0.0
    %434 = vmatmul.mubr.f32.gmra.mrb[0].mxu0 %v332
    %v435 = vpop.f32.mrb[0].mxu0
    %v436 = vadd.f32 0.0, %v435
    %v437 = vpop.f32.mrb[0].mxu0
    %438 = vdwg.mxu0
    %v439 = vmul.f32 %v18, %v401
    %v440 = vmul.f32 %v19, %v406
    %v441 = vmul.f32 %v20, %v411
    %v442 = vmul.f32 %v21, %v416
    %v443 = vmul.f32 %v22, %v421
    %v444 = vmul.f32 %v23, %v426
    %v445 = vmul.f32 %v24, %v431
    %v446 = vmul.f32 %v25, %v436
    %v447 = vld [vmem:[%s1] sm:$0x1]
    %v449 = vlaneseq
    %v450 = vshrl.u32 %v449, 7
    %v451 = vsub.s32 0, %v450
    %v452 = vrot.slane %v447, %v451
    %v454 = vmul.f32 %v439, %v452
    %v455 = vmul.f32 %v440, %v452
    %v456 = vmul.f32 %v441, %v452
    %v457 = vmul.f32 %v442, %v452
    %v458 = vmul.f32 %v443, %v452
    %v459 = vmul.f32 %v444, %v452
    %v460 = vmul.f32 %v445, %v452
    %v461 = vmul.f32 %v446, %v452
    %462 = vst [vmem:[#allocation2] sm:$0xff] %v454
    %463 = vst [vmem:[#allocation2 + $0x8] sm:$0xff] %v455
    %464 = vst [vmem:[#allocation2 + $0x10] sm:$0xff] %v456
    %465 = vst [vmem:[#allocation2 + $0x18] sm:$0xff] %v457
    %466 = vst [vmem:[#allocation2 + $0x20] sm:$0xff] %v458
    %467 = vst [vmem:[#allocation2 + $0x28] sm:$0xff] %v459
    %468 = vst [vmem:[#allocation2 + $0x30] sm:$0xff] %v460
    %469 = vst [vmem:[#allocation2 + $0x38] sm:$0xff] %v461
    // Predicated region
    $region18: #{tpu_custom_call.1} parent=1 // pred_check
      _
    $region19: #{tpu_custom_call.1} parent=1 // pred_check_branch
      %471 = sbr.rel (0) target = $region21
    $region20: #{tpu_custom_call.1} parent=1 // pred_region
      %s473 = ssub.s32 1024, 1024
      %474 = vsyncadd [#allocation3], %s473
      %s475 = sshll.u32 [#allocation2], 4
      %s476 = int_to_ptr.vmem [resolvable:$true] %s475
      %481 = dma.vmem_to_hbm [thread:$0]  %s476, 1024, %s4, [#allocation3], 128, 128, 8
    $region21: #{tpu_custom_call.1} parent=1 // pred_fallthru
      _
    // Predicated region
    $region22: #{tpu_custom_call.1} parent=1 // pred_check
      _
    $region23: #{tpu_custom_call.1} parent=1 // pred_check_branch
      %483 = sbr.rel (0) target = $region25
    $region24: #{tpu_custom_call.1} parent=1 // pred_region
      %484 = dma.done [#allocation3], 1024
    $region25: #{tpu_custom_call.1} parent=1 // pred_fallthru
      _
    %485 = vsyncpa [#allocation3], 1

</llo_original>
